<compile_context>
chip_gen: v6e
topology: v6e:2x2x1
jax: 0.10.0
libtpu: 0.0.40
codegen_flags: <defaults>
</compile_context>

<pallas_src>
import functools

import numpy as np
import jax
import jax.numpy as jnp
from jax.experimental import pallas as pl
from jax.experimental.pallas import tpu as pltpu


def _round_up(x, m):
    return ((x + m - 1) // m) * m


# ---------------------------------------------------------------------------
# Kernel body: one (TM, D) @ (D, E) MXU matmul + bias + l2norm epilogue.
# ---------------------------------------------------------------------------
def _encoder_image_kernel(x_ref,     # VMEM (TM, D)  native activation dtype
                          w_ref,     # VMEM (D, E)   compute dtype (folded 3-layer weight)
                          b_ref,     # VMEM (1, E)   f32           (folded 3-layer bias)
                          o_ref,     # VMEM (TM, E)  output dtype
                          *, apply_l2norm, approx_recip):
    # Cast the activation tile in-kernel (cheaper than a wrapper-side HBM cast pass).
    x = x_ref[...].astype(w_ref.dtype)
    emb = jnp.dot(x, w_ref[...], preferred_element_type=jnp.float32) + b_ref[...]

    if apply_l2norm:
        # SGRAF l2norm: eps is added to the norm (not the sum of squares).
        norm = jnp.sqrt(jnp.sum(emb * emb, axis=-1, keepdims=True)) + 1e-8
        if approx_recip:
            emb = emb * pl.reciprocal(norm, approx=True)   # EUP slot, ~free under MXU
        else:
            emb = emb / norm                               # exact path for verification
    o_ref[...] = emb.astype(o_ref.dtype)


# ---------------------------------------------------------------------------
# One-time parameter fold (exact algebra, done in f32), hoisted out of forward.
# ---------------------------------------------------------------------------
def fold_encoder_image_params(params, compute_dtype=jnp.bfloat16):
    """Fold fc -> fc1 -> fc2(concat) into a single (D, E) affine map.

    Call this ONCE and reuse the result: under jit these transposes / matmuls
    would otherwise be re-executed on every forward call.
    """
    w_fc, b_fc, w_fc1, b_fc1, w_fc2, b_fc2 = params   # PyTorch (out, in) layout
    H1 = w_fc.shape[0]
    E = w_fc1.shape[0]
    assert w_fc2.shape == (E, H1 + E), "fc2 must consume cat(fc_out, fc1_out)"

    f32 = jnp.float32
    w0_t = w_fc.astype(f32).T             # (D, H1)
    w1_t = w_fc1.astype(f32).T            # (H1, E)
    w2a_t = w_fc2[:, :H1].astype(f32).T   # (H1, E)
    w2b_t = w_fc2[:, H1:].astype(f32).T   # (E, E)

    # fc2(cat(y1, fc1(y1))) = y1 @ w12 + b12
    w12 = w2a_t + w1_t @ w2b_t                               # (H1, E)
    b12 = b_fc1.astype(f32) @ w2b_t + b_fc2.astype(f32)      # (E,)
    # y1 = x @ W0^T + b0  =>  emb = x @ (W0^T @ w12) + (b0 @ w12 + b12)
    w_tot = w0_t @ w12                                       # (D, E)
    b_tot = b_fc.astype(f32) @ w12 + b12                     # (E,)
    return w_tot.astype(compute_dtype), b_tot.reshape(1, E).astype(f32)


# ---------------------------------------------------------------------------
# Forward wrapper.
# ---------------------------------------------------------------------------
def encoder_image(images, w_tot, b_tot, *, no_imgnorm=False, out_dtype=None, tm=512):
    """Pallas EncoderImage forward.

    images: (B, R, D); (w_tot, b_tot) come from fold_encoder_image_params().
    Returns (B, R, E) in `out_dtype` (default: w_tot.dtype, i.e. bf16 fast path).
    """
    B, R, D = images.shape
    Dw, E = w_tot.shape
    assert Dw == D, "folded weight input dim must match img_dim"
    compute_dtype = w_tot.dtype
    out_dtype = compute_dtype if out_dtype is None else out_dtype

    # Flatten rows; no wrapper-side pad or cast (ragged tail is masked by the
    # pipeline, rows are independent, cast happens in-kernel).
    M = B * R
    x2 = images.reshape(M, D)

    # Row tile: multiple of 8 (sublane); default 512 is a multiple of 256
    # (v6e/v7x MXU) and of 128 (v5e MXU).
    tm = min(_round_up(tm, 8), _round_up(M, 8))
    steps = pl.cdiv(M, tm)
    if steps > 1 and steps % 2 == 1:
        # v7x shards the "parallel" axis across 2 TensorCores; prefer an even
        # step count so neither core idles (minor alignment trade-off).
        tm_even = _round_up(pl.cdiv(M, steps + 1), 8)
        if tm_even >= 8:
            tm = tm_even
            steps = pl.cdiv(M, tm)

    kernel = functools.partial(
        _encoder_image_kernel,
        apply_l2norm=not no_imgnorm,
        approx_recip=(compute_dtype != jnp.float32),
    )

    out = pl.pallas_call(
        kernel,
        out_shape=jax.ShapeDtypeStruct((M, E), out_dtype),
        grid_spec=pltpu.PrefetchScalarGridSpec(
            num_scalar_prefetch=0,
            grid=(steps,),
            in_specs=[
                # Activation tile streams through the pipeline (double-buffered).
                pl.BlockSpec((tm, D), lambda i: (i, 0)),
                # Folded weight / bias: constant block index -> fetched once;
                # single-buffered so no duplicate VMEM copy is allocated.
                pl.BlockSpec((D, E), lambda i: (0, 0), pipeline_mode=pl.Buffered(1)),
                pl.BlockSpec((1, E), lambda i: (0, 0), pipeline_mode=pl.Buffered(1)),
            ],
            out_specs=pl.BlockSpec((tm, E), lambda i: (i, 0)),
        ),
        compiler_params=pltpu.CompilerParams(
            dimension_semantics=("parallel",),      # rows independent -> megacore/2-TC
            vmem_limit_bytes=24 * 1024 * 1024,      # ~7-14 MiB actual need at real sizes
        ),
    )(x2, w_tot, b_tot)

    return out.reshape(B, R, E)


def reference(images, params, no_imgnorm=False):
    """Pure-JAX literal transcription of the PyTorch forward (for verification)."""
    w_fc, b_fc, w_fc1, b_fc1, w_fc2, b_fc2 = params
    y1 = images @ w_fc.T + b_fc
    y2 = y1 @ w_fc1.T + b_fc1
    emb = jnp.concatenate([y1, y2], axis=-1) @ w_fc2.T + b_fc2
    if not no_imgnorm:
        emb = emb / (jnp.sqrt(jnp.sum(emb * emb, axis=-1, keepdims=True)) + 1e-8)
    return emb


if __name__ == "__main__":
    # Small, deterministic shapes (real SGRAF: batch x 36 regions, 2048 -> 1024 -> 512).
    B, R = 2, 8          # batch, regions per image
    D = 256              # img_dim     (scaled-down 2048)
    H1 = 128             # fc hidden   (scaled-down 1024)
    E = 128              # embed_size  (scaled-down 512)

    key = jax.random.PRNGKey(0)
    ks = jax.random.split(key, 7)
    images = jax.random.normal(ks[0], (B, R, D), jnp.float32)

    def xavier(k, out_f, in_f):
        r = float(np.sqrt(6.0) / np.sqrt(in_f + out_f))
        return jax.random.uniform(k, (out_f, in_f), jnp.float32, minval=-r, maxval=r)

    w_fc = xavier(ks[1], H1, D)
    w_fc1 = xavier(ks[2], E, H1)
    w_fc2 = xavier(ks[3], E, H1 + E)
    b_fc = 0.1 * jax.random.normal(ks[4], (H1,), jnp.float32)
    b_fc1 = 0.1 * jax.random.normal(ks[5], (E,), jnp.float32)
    b_fc2 = 0.1 * jax.random.normal(ks[6], (E,), jnp.float32)
    params = (w_fc, b_fc, w_fc1, b_fc1, w_fc2, b_fc2)

    ref = jax.block_until_ready(reference(images, params))

    # Fast path: fold once to bf16, bf16 MXU operands + f32 accumulation,
    # bf16 output, approx reciprocal in the l2norm epilogue.
    w_bf16, b_bias = fold_encoder_image_params(params, compute_dtype=jnp.bfloat16)
    out_bf16 = jax.block_until_ready(encoder_image(images, w_bf16, b_bias))
    assert out_bf16.shape == (B, R, E) and out_bf16.dtype == jnp.bfloat16
    if not np.allclose(np.asarray(out_bf16.astype(jnp.float32)), np.asarray(ref),
                       rtol=3e-2, atol=3e-2):
        raise AssertionError("bf16 kernel mismatch vs reference")

    # Verification path: f32 fold + f32 compute + exact divide -> tight match
    # against the literal (un-folded, with concat) reference.
    w_f32, b_f32 = fold_encoder_image_params(params, compute_dtype=jnp.float32)
    out_f32 = jax.block_until_ready(
        encoder_image(images, w_f32, b_f32, out_dtype=jnp.float32))
    if not np.allclose(np.asarray(out_f32), np.asarray(ref), rtol=1e-3, atol=1e-4):
        raise AssertionError("f32 kernel mismatch vs reference")

    print("KERNEL_OK")
</pallas_src>

<mosaic_0001>
module attributes {stable_mosaic.version = 11 : i64} {
  func.func @_encoder_image_kernel(%arg0: i32, %arg1: memref<16x256xf32, #tpu.memory_space<vmem>>, %arg2: memref<256x128xbf16, #tpu.memory_space<vmem>>, %arg3: memref<1x128xf32, #tpu.memory_space<vmem>>, %arg4: memref<16x128xbf16, #tpu.memory_space<vmem>>) attributes {dimension_semantics = [#tpu.dimension_semantics<parallel>], iteration_bounds = array<i64: 1>, scalar_prefetch = 0 : i64, scratch_operands = 0 : i64, tpu.core_type = #tpu.core_type<tc>, window_params = [{transform_indices = @transform_0, window_bounds = array<i64: 16, 256>}, {pipeline_mode = #tpu.pipeline_mode<synchronous>, transform_indices = @transform_1, window_bounds = array<i64: 256, 128>}, {pipeline_mode = #tpu.pipeline_mode<synchronous>, transform_indices = @transform_2, window_bounds = array<i64: 1, 128>}, {transform_indices = @transform_3, window_bounds = array<i64: 16, 128>}]} {
    %c0 = arith.constant 0 : index
    %c0_0 = arith.constant 0 : index
    %0 = vector.load %arg1[%c0, %c0_0] : memref<16x256xf32, #tpu.memory_space<vmem>>, vector<16x256xf32>
    %1 = arith.truncf %0 : vector<16x256xf32> to vector<16x256xbf16>
    %c0_1 = arith.constant 0 : index
    %c0_2 = arith.constant 0 : index
    %2 = vector.load %arg2[%c0_1, %c0_2] : memref<256x128xbf16, #tpu.memory_space<vmem>>, vector<256x128xbf16>
    %cst = arith.constant dense<0.000000e+00> : vector<16x128xf32>
    %3 = tpu.matmul %1, %2, %cst {dimension_numbers = #tpu.dot_dimension_numbers<[1], [0], [0], [1], [0, 0, 1, 1], [], []>} : vector<16x256xbf16>, vector<256x128xbf16>, vector<16x128xf32> -> vector<16x128xf32>
    %c0_3 = arith.constant 0 : index
    %c0_4 = arith.constant 0 : index
    %4 = vector.load %arg3[%c0_3, %c0_4] : memref<1x128xf32, #tpu.memory_space<vmem>>, vector<1x128xf32>
    %5 = vector.broadcast %4 : vector<1x128xf32> to vector<16x128xf32>
    %6 = arith.addf %3, %5 : vector<16x128xf32>
    %7 = arith.mulf %6, %6 : vector<16x128xf32>
    %cst_5 = arith.constant dense<0.000000e+00> : vector<16xf32>
    %8 = vector.multi_reduction <add>, %7, %cst_5 [1] : vector<16x128xf32> to vector<16xf32>
    %9 = vector.shape_cast %8 : vector<16xf32> to vector<16x1xf32>
    %10 = math.sqrt %9 : vector<16x1xf32>
    %cst_6 = arith.constant 9.99999993E-9 : f32
    %11 = vector.broadcast %cst_6 : f32 to vector<16x1xf32>
    %12 = arith.addf %10, %11 : vector<16x1xf32>
    %13 = tpu.reciprocal %12 {approx = true} : vector<16x1xf32> -> vector<16x1xf32>
    %14 = vector.broadcast %13 : vector<16x1xf32> to vector<16x128xf32>
    %15 = arith.mulf %6, %14 : vector<16x128xf32>
    %16 = arith.truncf %15 : vector<16x128xf32> to vector<16x128xbf16>
    %c0_7 = arith.constant 0 : index
    %c0_8 = arith.constant 0 : index
    %17 = vector.load %arg4[%c0_7, %c0_8] : memref<16x128xbf16, #tpu.memory_space<vmem>>, vector<16x128xbf16>
    tpu.vector_store %arg4[%c0_7, %c0_8], %16 {strides = array<i32>} : memref<16x128xbf16, #tpu.memory_space<vmem>>, vector<16x128xbf16>,
    return
  }
  func.func @transform_0(%arg0: i32) -> (i32, i32) {
    %c0_i32 = arith.constant 0 : i32
    %c0_i32_0 = arith.constant 0 : i32
    return %arg0, %c0_i32 : i32, i32
  }
  func.func @transform_1(%arg0: i32) -> (i32, i32) {
    %c0_i32 = arith.constant 0 : i32
    %c0_i32_0 = arith.constant 0 : i32
    %c0_i32_1 = arith.constant 0 : i32
    return %c0_i32, %c0_i32_0 : i32, i32
  }
  func.func @transform_2(%arg0: i32) -> (i32, i32) {
    %c0_i32 = arith.constant 0 : i32
    %c0_i32_0 = arith.constant 0 : i32
    %c0_i32_1 = arith.constant 0 : i32
    return %c0_i32, %c0_i32_0 : i32, i32
  }
  func.func @transform_3(%arg0: i32) -> (i32, i32) {
    %c0_i32 = arith.constant 0 : i32
    %c0_i32_0 = arith.constant 0 : i32
    return %arg0, %c0_i32 : i32, i32
  }
}

</mosaic_0001>

<llo_original>
// kernel: tpu_custom_call.1
$region0: #{tpu_custom_call.1}
  #allocation0 [shape = 'u32[]', space=smem, size = 0x4, offset = 0x4, fixed_abs, tag = 'smem constant byte address 0x4 - core index']
  #allocation1 [shape = 'u32[144,128]{1,0:T(1,128)}', space=vmem, size = 0x12000, scoped, tag = 'internal scratch']
  %s0 = inlined_call_operand.hbm [shape: f32[16,256], index: 0, kind: input, shape index: {}]
  %s1 = inlined_call_operand.hbm [shape: bf16[256,128], index: 1, kind: input, shape index: {}]
  %s2 = inlined_call_operand.vmem [shape: f32[1,128], index: 2, kind: input, shape index: {}]
  %s3 = inlined_call_operand.hbm [shape: bf16[16,128], index: 3, kind: output, shape index: {}]
  %s4 = sld [smem:[#allocation0]]
  $region30: #{tpu_custom_call.1} parent=0
    _
  %s6 = ssub.s32 1, %s4
  %s7 = scalar_select 0, %s6, %s4
  $region1: #{tpu_custom_call.1} parent=0
    #allocation2 [shape = 'u8[16384]{0}', space=vmem, size = 0x4000, scoped, tag = 'input window, operand 0, single buffered']
    #allocation3 [shape = 's32[1]{0}', space=sflag, size = 0x4, scoped, tag = 'scoped memory for tpu_custom_call.1']
    #allocation4 [shape = 's32[1]{0}', space=sflag, size = 0x4, scoped, tag = 'scoped memory for tpu_custom_call.1']
    #allocation5 [shape = 'u8[65536]{0}', space=vmem, size = 0x10000, scoped, tag = 'input window, operand 1, single buffered']
    #allocation6 [shape = 's32[1]{0}', space=sflag, size = 0x4, scoped, tag = 'scoped memory for tpu_custom_call.1']
    #allocation7 [shape = 'u8[4096]{0}', space=vmem, size = 0x1000, scoped, tag = 'output window, operand 0, single buffered']
    %8 = vsyncpa [#allocation3], 0
    %9 = vsyncpa [#allocation6], 0
    %10 = vsyncpa [#allocation4], 0
    // Predicated region
    $region2: #{tpu_custom_call.1} parent=1 // pred_check
      _
    $region3: #{tpu_custom_call.1} parent=1 // pred_check_branch
      %12 = sbr.rel (0) target = $region5
    $region4: #{tpu_custom_call.1} parent=1 // pred_region
      %s14 = ssub.s32 512, 512
      %15 = vsyncadd [#allocation3], %s14
      %s16 = sshll.u32 [#allocation2], 4
      %s17 = int_to_ptr.vmem [resolvable:$true] %s16
      %22 = dma.hbm_to_vmem [thread:$0]  %s0, 512, %s17, [#allocation3], 256, 256, 16
    $region5: #{tpu_custom_call.1} parent=1 // pred_fallthru
      _
    // Predicated region
    $region6: #{tpu_custom_call.1} parent=1 // pred_check
      _
    $region7: #{tpu_custom_call.1} parent=1 // pred_check_branch
      %24 = sbr.rel (0) target = $region9
    $region8: #{tpu_custom_call.1} parent=1 // pred_region
      %s26 = ssub.s32 2048, 2048
      %27 = vsyncadd [#allocation6], %s26
      %s28 = sshll.u32 [#allocation5], 4
      %s29 = int_to_ptr.vmem [resolvable:$true] %s28
      %34 = dma.hbm_to_vmem [thread:$0]  %s1, 2048, %s29, [#allocation6], 64, 64, 4
    $region9: #{tpu_custom_call.1} parent=1 // pred_fallthru
      _
    // Predicated region
    $region10: #{tpu_custom_call.1} parent=1 // pred_check
      _
    $region11: #{tpu_custom_call.1} parent=1 // pred_check_branch
      %36 = sbr.rel (0) target = $region13
    $region12: #{tpu_custom_call.1} parent=1 // pred_region
      _
    $region13: #{tpu_custom_call.1} parent=1 // pred_fallthru
      _
    // Predicated region
    $region14: #{tpu_custom_call.1} parent=1 // pred_check
      _
    $region15: #{tpu_custom_call.1} parent=1 // pred_check_branch
      %38 = sbr.rel (0) target = $region17
    $region16: #{tpu_custom_call.1} parent=1 // pred_region
      %39 = dma.done [#allocation3], 512
    $region17: #{tpu_custom_call.1} parent=1 // pred_fallthru
      _
    // Predicated region
    $region18: #{tpu_custom_call.1} parent=1 // pred_check
      _
    $region19: #{tpu_custom_call.1} parent=1 // pred_check_branch
      %41 = sbr.rel (0) target = $region21
    $region20: #{tpu_custom_call.1} parent=1 // pred_region
      %42 = dma.done [#allocation6], 2048
    $region21: #{tpu_custom_call.1} parent=1 // pred_fallthru
      _
    %v44 = vld [vmem:[#allocation2] sm:$0xff]
    %v45 = vld [vmem:[#allocation2 + $0x8] sm:$0xff]
    %v46 = vld [vmem:[#allocation2 + $0x10] sm:$0xff]
    %v47 = vld [vmem:[#allocation2 + $0x18] sm:$0xff]
    %v48 = vpack.c.bf16 %v46, %v44
    %v49 = vpack.c.bf16 %v47, %v45
    %v50 = vld [vmem:[#allocation5] sm:$0xf]
    %v51 = vld [vmem:[#allocation5 + $0x4] sm:$0xf]
    %v52 = vld [vmem:[#allocation5 + $0x8] sm:$0xf]
    %v53 = vld [vmem:[#allocation5 + $0xc] sm:$0xf]
    %v54 = vld [vmem:[#allocation5 + $0x10] sm:$0xf]
    %v55 = vld [vmem:[#allocation5 + $0x14] sm:$0xf]
    %v56 = vld [vmem:[#allocation5 + $0x18] sm:$0xf]
    %v57 = vld [vmem:[#allocation5 + $0x1c] sm:$0xf]
    %v58 = vld [vmem:[#allocation5 + $0x20] sm:$0xf]
    %v59 = vld [vmem:[#allocation5 + $0x24] sm:$0xf]
    %v60 = vld [vmem:[#allocation5 + $0x28] sm:$0xf]
    %v61 = vld [vmem:[#allocation5 + $0x2c] sm:$0xf]
    %v62 = vld [vmem:[#allocation5 + $0x30] sm:$0xf]
    %v63 = vld [vmem:[#allocation5 + $0x34] sm:$0xf]
    %v64 = vld [vmem:[#allocation5 + $0x38] sm:$0xf]
    %v65 = vld [vmem:[#allocation5 + $0x3c] sm:$0xf]
    %v66 = vld [vmem:[#allocation5 + $0x40] sm:$0xf]
    %v67 = vld [vmem:[#allocation5 + $0x44] sm:$0xf]
    %v68 = vld [vmem:[#allocation5 + $0x48] sm:$0xf]
    %v69 = vld [vmem:[#allocation5 + $0x4c] sm:$0xf]
    %v70 = vld [vmem:[#allocation5 + $0x50] sm:$0xf]
    %v71 = vld [vmem:[#allocation5 + $0x54] sm:$0xf]
    %v72 = vld [vmem:[#allocation5 + $0x58] sm:$0xf]
    %v73 = vld [vmem:[#allocation5 + $0x5c] sm:$0xf]
    %v74 = vld [vmem:[#allocation5 + $0x60] sm:$0xf]
    %v75 = vld [vmem:[#allocation5 + $0x64] sm:$0xf]
    %v76 = vld [vmem:[#allocation5 + $0x68] sm:$0xf]
    %v77 = vld [vmem:[#allocation5 + $0x6c] sm:$0xf]
    %v78 = vld [vmem:[#allocation5 + $0x70] sm:$0xf]
    %v79 = vld [vmem:[#allocation5 + $0x74] sm:$0xf]
    %v80 = vld [vmem:[#allocation5 + $0x78] sm:$0xf]
    %v81 = vld [vmem:[#allocation5 + $0x7c] sm:$0xf]
    %v82 = vld [vmem:[%s2] sm:$0x1]
    %v84 = vlaneseq
    %v85 = vshrl.u32 %v84, 7
    %v86 = vsub.s32 0, %v85
    %v87 = vrot.slane %v82, %v86
    %v121 = vunpack.c.l.b16 %v50
    %v122 = vunpack.c.l.b16 %v51
    %v123 = vunpack.c.l.b16 %v52
    %v124 = vunpack.c.l.b16 %v53
    %v125 = vunpack.c.l.b16 %v54
    %v126 = vunpack.c.l.b16 %v55
    %v127 = vunpack.c.l.b16 %v56
    %v128 = vunpack.c.l.b16 %v57
    %v129 = vunpack.c.l.b16 %v58
    %v130 = vunpack.c.l.b16 %v59
    %v131 = vunpack.c.l.b16 %v60
    %v132 = vunpack.c.l.b16 %v61
    %v133 = vunpack.c.l.b16 %v62
    %v134 = vunpack.c.l.b16 %v63
    %v135 = vunpack.c.l.b16 %v64
    %v136 = vunpack.c.l.b16 %v65
    %v137 = vunpack.c.l.b16 %v66
    %v138 = vunpack.c.l.b16 %v67
    %v139 = vunpack.c.l.b16 %v68
    %v140 = vunpack.c.l.b16 %v69
    %v141 = vunpack.c.l.b16 %v70
    %v142 = vunpack.c.l.b16 %v71
    %v143 = vunpack.c.l.b16 %v72
    %v144 = vunpack.c.l.b16 %v73
    %v145 = vunpack.c.l.b16 %v74
    %v146 = vunpack.c.l.b16 %v75
    %v147 = vunpack.c.l.b16 %v76
    %v148 = vunpack.c.l.b16 %v77
    %v149 = vunpack.c.l.b16 %v78
    %v150 = vunpack.c.l.b16 %v79
    %v151 = vunpack.c.l.b16 %v80
    %v152 = vunpack.c.l.b16 %v81
    %v153 = vpack.c.b16 %v122, %v121
    %v154 = vpack.c.b16 %v124, %v123
    %v155 = vpack.c.b16 %v126, %v125
    %v156 = vpack.c.b16 %v128, %v127
    %v157 = vpack.c.b16 %v130, %v129
    %v158 = vpack.c.b16 %v132, %v131
    %v159 = vpack.c.b16 %v134, %v133
    %v160 = vpack.c.b16 %v136, %v135
    %v161 = vpack.c.b16 %v138, %v137
    %v162 = vpack.c.b16 %v140, %v139
    %v163 = vpack.c.b16 %v142, %v141
    %v164 = vpack.c.b16 %v144, %v143
    %v165 = vpack.c.b16 %v146, %v145
    %v166 = vpack.c.b16 %v148, %v147
    %v167 = vpack.c.b16 %v150, %v149
    %v168 = vpack.c.b16 %v152, %v151
    %185 = vmatprep.subr.bf16.mxu0 0
    %186 = vmatpush1.bf16.msra.mxu0 %v160
    %187 = vmatprep.subr.bf16.mxu0 0
    %188 = vmatpush1.bf16.msra.mxu0 %v159
    %189 = vmatprep.subr.bf16.mxu0 0
    %190 = vmatpush1.bf16.msra.mxu0 %v158
    %191 = vmatprep.subr.bf16.mxu0 0
    %192 = vmatpush1.bf16.msra.mxu0 %v157
    %193 = vmatprep.subr.bf16.mxu0 0
    %194 = vmatpush1.bf16.msra.mxu0 %v156
    %195 = vmatprep.subr.bf16.mxu0 0
    %196 = vmatpush1.bf16.msra.mxu0 %v155
    %197 = vmatprep.subr.bf16.mxu0 0
    %198 = vmatpush1.bf16.msra.mxu0 %v154
    %199 = vmatprep.subr.bf16.mxu0 0
    %200 = vmatpush1.bf16.msra.mxu0 %v153
    %201 = vmatprep.subr.bf16.mxu0 0
    %202 = vmatpush2.bf16.msra.mxu0 %v168
    %203 = vmatprep.subr.bf16.mxu0 0
    %204 = vmatpush2.bf16.msra.mxu0 %v167
    %205 = vmatprep.subr.bf16.mxu0 0
    %206 = vmatpush2.bf16.msra.mxu0 %v166
    %207 = vmatprep.subr.bf16.mxu0 0
    %208 = vmatpush2.bf16.msra.mxu0 %v165
    %209 = vmatprep.subr.bf16.mxu0 0
    %210 = vmatpush2.bf16.msra.mxu0 %v164
    %211 = vmatprep.subr.bf16.mxu0 0
    %212 = vmatpush2.bf16.msra.mxu0 %v163
    %213 = vmatprep.subr.bf16.mxu0 0
    %214 = vmatpush2.bf16.msra.mxu0 %v162
    %215 = vmatprep.subr.bf16.mxu0 0
    %216 = vmatpush2.bf16.msra.mxu0 %v161
    %217 = vmatprep.mubr.bf16.mxu0 %v49
    %218 = vmatmul.mubr.bf16.gmra.mxu0 %v48
    %v219 = vpop.f32.mrf.mxu0
    %v220 = vadd.f32 %v87, %v219
    %v221 = vpop.f32.mrf.mxu0
    %v222 = vpop.f32.mrf.mxu0
    %v223 = vadd.f32 %v87, %v222
    %v224 = vpop.f32.mrf.mxu0
    %225 = vdwg.mxu0
    %v226 = vmul.f32 %v220, %v220
    %v227 = vmul.f32 %v223, %v223
    %228 = vadd.xlane.f32.xlu0 %v226
    %v229 = vpop.xlane.xlu0 %228
    %230 = vadd.xlane.f32.xlu0 %v227
    %v231 = vpop.xlane.xlu0 %230
    %v232 = vrsqrt.pop %v229
    %v233 = vmul.f32 %v229, %v232
    %vm234 = vcmp.eq.f32.partialorder %v229, inf
    %v235 = vsel %vm234, %v229, %v233
    %vm236 = vcmp.eq.f32.partialorder %v229, 0.0
    %v237 = vand.u32 %v229, 2147483648
    %v238 = vsel %vm236, %v237, %v235
    %v239 = vrsqrt.pop %v231
    %v240 = vmul.f32 %v231, %v239
    %vm241 = vcmp.eq.f32.partialorder %v231, inf
    %v242 = vsel %vm241, %v231, %v240
    %vm243 = vcmp.eq.f32.partialorder %v231, 0.0
    %v244 = vand.u32 %v231, 2147483648
    %v245 = vsel %vm243, %v244, %v242
    %v246 = vadd.f32 %v238, 1e-08
    %v247 = vadd.f32 %v245, 1e-08
    %v248 = vrcp.pop %v246
    %v249 = vrcp.pop %v247
    %v250 = vmul.f32 %v220, %v248
    %v251 = vmul.f32 %v223, %v249
    %v252 = vpack.c.bf16 %v251, %v250
    %v254 = vunpack.c.l.b16 %v252
    %v255 = vunpack.c.h.b16 %v252
    %v256 = vpack.c.b16 %v254, %v254
    %v257 = vpack.c.b16 %v255, %v255
    %260 = vst [vmem:[#allocation7] sm:$0xf] %v256
    %261 = vst [vmem:[#allocation7 + $0x4] sm:$0xf] %v257
    // Predicated region
    $region22: #{tpu_custom_call.1} parent=1 // pred_check
      _
    $region23: #{tpu_custom_call.1} parent=1 // pred_check_branch
      %263 = sbr.rel (0) target = $region25
    $region24: #{tpu_custom_call.1} parent=1 // pred_region
      %s265 = ssub.s32 128, 128
      %266 = vsyncadd [#allocation4], %s265
      %s267 = sshll.u32 [#allocation7], 4
      %s268 = int_to_ptr.vmem [resolvable:$true] %s267
      %273 = dma.vmem_to_hbm [thread:$0]  %s268, 128, %s3, [#allocation4], 64, 64, 4
    $region25: #{tpu_custom_call.1} parent=1 // pred_fallthru
      _
    // Predicated region
    $region26: #{tpu_custom_call.1} parent=1 // pred_check
      _
    $region27: #{tpu_custom_call.1} parent=1 // pred_check_branch
      %275 = sbr.rel (0) target = $region29
    $region28: #{tpu_custom_call.1} parent=1 // pred_region
      %276 = dma.done [#allocation4], 128
    $region29: #{tpu_custom_call.1} parent=1 // pred_fallthru
      _
    %277 = vsyncpa [#allocation3], 1
    %278 = vsyncpa [#allocation6], 1
    %279 = vsyncpa [#allocation4], 1

</llo_original>
